<compile_context>
chip_gen: v6e
topology: v6e:2x2x1
jax: 0.10.0
libtpu: 0.0.40
codegen_flags: <defaults>
</compile_context>

<pallas_src>
import jax
import jax.numpy as jnp
from jax import lax
from jax.experimental import pallas as pl
from jax.experimental.pallas import tpu as pltpu

# Hidden-layer hyperparameters (the module references these as globals).
MODEL_HIDDEN_LAYER_1_UNITS = 64
MODEL_HIDDEN_LAYER_2_UNITS = 32
MODEL_OUTPUT_UNITS = 1

_ROW_ALIGN = 16  # bf16 sublane packing: keep batch tiles 16-row aligned


def _round_up(n, m):
    return ((n + m - 1) // m) * m


def _choose_tiling(B, max_block_rows):
    """Pick (TB, n_tiles, B_pad).

    * >=2 tiles whenever B allows (lets dimension_semantics=("parallel",)
      shard the batch across v7x's two TensorCores).
    * prefer a tile count that divides the aligned batch exactly (no padding);
      otherwise padding is bounded by ~_ROW_ALIGN rows per tile.
    * tiles capped at max_block_rows and 16-row aligned.
    """
    Ba = _round_up(max(B, _ROW_ALIGN), _ROW_ALIGN)
    min_tiles = 2 if Ba >= 2 * _ROW_ALIGN else 1
    n_tiles = max(min_tiles, pl.cdiv(Ba, max_block_rows))
    for cand in range(n_tiles, n_tiles + 8):
        if Ba % (cand * _ROW_ALIGN) == 0 and Ba // cand <= max_block_rows:
            return Ba // cand, cand, Ba
    TB = _round_up(pl.cdiv(Ba, n_tiles), _ROW_ALIGN)
    n_tiles = pl.cdiv(Ba, TB)
    return TB, n_tiles, n_tiles * TB


def _mlp_kernel(x_ref, w1_ref, b1_ref, w2_ref, b2_ref, w3t_ref, b3_ref, o_ref):
    """fc1 -> relu -> fc2 -> relu -> fc3 for one TB-row batch tile."""
    x = x_ref[...]
    if x.dtype != jnp.bfloat16:          # only if caller streamed f32
        x = x.astype(jnp.bfloat16)

    # MXU matmuls: bf16 operands, f32 accumulation; bias/relu in f32.
    h1 = jnp.dot(x, w1_ref[...], preferred_element_type=jnp.float32) + b1_ref[...]
    h1 = jnp.maximum(h1, 0.0)

    h2 = jnp.dot(h1.astype(jnp.bfloat16), w2_ref[...],
                 preferred_element_type=jnp.float32) + b2_ref[...]
    h2 = jnp.maximum(h2, 0.0)

    # fc3 (out_features == 1): contract the resident (1, H2) w3 row against h2
    # over H2 -> lane-dense (1, TB) output row (no padded MXU N, no masked
    # column stores).
    out_row = lax.dot_general(
        w3t_ref[...], h2.astype(jnp.bfloat16),
        dimension_numbers=(((1,), (1,)), ((), ())),
        preferred_element_type=jnp.float32) + b3_ref[...]

    o_ref[...] = out_row.reshape(o_ref.shape).astype(o_ref.dtype)


def prepare_params(params):
    """One-time conversion of f32 torch-style params into kernel-ready form."""
    return {
        "w1": params["w1"].astype(jnp.bfloat16),                    # (D, H1)
        "b1": params["b1"].reshape(1, -1).astype(jnp.float32),      # (1, H1)
        "w2": params["w2"].astype(jnp.bfloat16),                    # (H1, H2)
        "b2": params["b2"].reshape(1, -1).astype(jnp.float32),      # (1, H2)
        "w3t": jnp.transpose(params["w3"]).astype(jnp.bfloat16),    # (1, H2)
        "b3": params["b3"].reshape(1, 1).astype(jnp.float32),       # (1, 1)
    }


def _forward_jnp(x, kp):
    """Plain fused-XLA path for tiny batches (same numerics as the kernel)."""
    bf16 = jnp.bfloat16
    h1 = jnp.maximum(
        jnp.dot(x.astype(bf16), kp["w1"], preferred_element_type=jnp.float32)
        + kp["b1"], 0.0)
    h2 = jnp.maximum(
        jnp.dot(h1.astype(bf16), kp["w2"], preferred_element_type=jnp.float32)
        + kp["b2"], 0.0)
    return jnp.dot(h2.astype(bf16), kp["w3t"].T,
                   preferred_element_type=jnp.float32) + kp["b3"]


def regression_model_forward(x, kparams, *, max_block_rows=8192,
                             min_pallas_rows=512):
    """Runs the MLP over a 1-D batch grid.

    x:        (B, input_dim), preferably bf16 (f32 accepted, cast in-kernel)
    kparams:  output of prepare_params()
    returns:  (B, 1) float32
    """
    B, D = x.shape
    H1 = kparams["w1"].shape[1]
    H2 = kparams["w2"].shape[1]

    if B < min_pallas_rows:
        # pallas_call launch + DMA setup dwarfs the work at tiny batches.
        return _forward_jnp(x, kparams)

    TB, n_tiles, B_pad = _choose_tiling(B, max_block_rows)
    if B_pad != B:
        x = jnp.pad(x, ((0, B_pad - B), (0, 0)))

    in_specs = [
        pl.BlockSpec((TB, D), lambda i: (i, 0)),     # x: streamed, double-buffered
        pl.BlockSpec((D, H1), lambda i: (0, 0)),     # w1: VMEM-resident
        pl.BlockSpec((1, H1), lambda i: (0, 0)),     # b1
        pl.BlockSpec((H1, H2), lambda i: (0, 0)),    # w2
        pl.BlockSpec((1, H2), lambda i: (0, 0)),     # b2
        pl.BlockSpec((1, H2), lambda i: (0, 0)),     # w3^T row
        pl.BlockSpec((1, 1), lambda i: (0, 0)),      # b3
    ]
    out_specs = pl.BlockSpec((1, 1, TB), lambda i: (i, 0, 0))  # lane-dense row

    out = pl.pallas_call(
        _mlp_kernel,
        out_shape=jax.ShapeDtypeStruct((n_tiles, 1, TB), jnp.float32),
        grid=(n_tiles,),
        in_specs=in_specs,
        out_specs=out_specs,
        compiler_params=pltpu.CompilerParams(
            dimension_semantics=("parallel",),
            vmem_limit_bytes=32 * 1024 * 1024),
    )(x, kparams["w1"], kparams["b1"], kparams["w2"], kparams["b2"],
      kparams["w3t"], kparams["b3"])

    out = out.reshape(B_pad, 1)
    return out[:B] if B_pad != B else out


def init_params(key, input_dim):
    """Deterministic init mimicking nn.Linear's U(-1/sqrt(fan_in), 1/sqrt(fan_in))."""
    def linear(key, fan_in, fan_out):
        kw, kb = jax.random.split(key)
        bound = 1.0 / jnp.sqrt(jnp.float32(fan_in))
        w = jax.random.uniform(kw, (fan_in, fan_out), jnp.float32, -bound, bound)
        b = jax.random.uniform(kb, (1, fan_out), jnp.float32, -bound, bound)
        return w, b

    k1, k2, k3 = jax.random.split(key, 3)
    w1, b1 = linear(k1, input_dim, MODEL_HIDDEN_LAYER_1_UNITS)
    w2, b2 = linear(k2, MODEL_HIDDEN_LAYER_1_UNITS, MODEL_HIDDEN_LAYER_2_UNITS)
    w3, b3 = linear(k3, MODEL_HIDDEN_LAYER_2_UNITS, MODEL_OUTPUT_UNITS)
    return {"w1": w1, "b1": b1, "w2": w2, "b2": b2, "w3": w3, "b3": b3}


def reference_forward(x, p):
    """Pure-JAX reference with the same bf16-operand / f32-accumulate semantics."""
    bf16 = jnp.bfloat16
    h1 = jnp.maximum(
        jnp.dot(x.astype(bf16), p["w1"].astype(bf16),
                preferred_element_type=jnp.float32) + p["b1"], 0.0)
    h2 = jnp.maximum(
        jnp.dot(h1.astype(bf16), p["w2"].astype(bf16),
                preferred_element_type=jnp.float32) + p["b2"], 0.0)
    return jnp.dot(h2.astype(bf16), p["w3"].astype(bf16),
                   preferred_element_type=jnp.float32) + p["b3"]


if __name__ == "__main__":
    key = jax.random.PRNGKey(0)
    k_x, k_p, k_x2 = jax.random.split(key, 3)

    INPUT_DIM = 16
    BATCH = 8

    params = init_params(k_p, INPUT_DIM)
    kparams = prepare_params(params)   # one-time weight prep (hoisted)

    # Small-shape demo, forced through the Pallas path so the kernel runs.
    x = jax.random.normal(k_x, (BATCH, INPUT_DIM), dtype=jnp.float32)
    x_bf16 = x.astype(jnp.bfloat16)    # x delivered to the kernel as bf16
    out = regression_model_forward(x_bf16, kparams, min_pallas_rows=0)
    out = jax.block_until_ready(out)
    ref = reference_forward(x_bf16.astype(jnp.float32), params)
    assert out.shape == (BATCH, MODEL_OUTPUT_UNITS)
    assert jnp.allclose(out, ref, atol=2e-3, rtol=2e-3)

    # Multi-tile batch: exercises >=2 "parallel" grid steps + padding policy.
    B2 = 1000
    x2 = jax.random.normal(k_x2, (B2, INPUT_DIM), dtype=jnp.float32).astype(jnp.bfloat16)
    out2 = jax.block_until_ready(regression_model_forward(x2, kparams))
    ref2 = reference_forward(x2.astype(jnp.float32), params)
    assert out2.shape == (B2, MODEL_OUTPUT_UNITS)
    assert jnp.allclose(out2, ref2, atol=2e-3, rtol=2e-3)

    print("KERNEL_OK")
</pallas_src>

<mosaic_0001>
module attributes {stable_mosaic.version = 11 : i64} {
  func.func @_mlp_kernel(%arg0: i32, %arg1: memref<16x16xbf16, #tpu.memory_space<vmem>>, %arg2: memref<16x64xbf16, #tpu.memory_space<vmem>>, %arg3: memref<1x64xf32, #tpu.memory_space<vmem>>, %arg4: memref<64x32xbf16, #tpu.memory_space<vmem>>, %arg5: memref<1x32xf32, #tpu.memory_space<vmem>>, %arg6: memref<1x32xbf16, #tpu.memory_space<vmem>>, %arg7: memref<1x1xf32, #tpu.memory_space<vmem>>, %arg8: memref<1x1x16xf32, #tpu.memory_space<vmem>>) attributes {dimension_semantics = [#tpu.dimension_semantics<parallel>], iteration_bounds = array<i64: 1>, scalar_prefetch = 0 : i64, scratch_operands = 0 : i64, tpu.core_type = #tpu.core_type<tc>, window_params = [{transform_indices = @transform_0, window_bounds = array<i64: 16, 16>}, {pipeline_mode = #tpu.pipeline_mode<synchronous>, transform_indices = @transform_1, window_bounds = array<i64: 16, 64>}, {pipeline_mode = #tpu.pipeline_mode<synchronous>, transform_indices = @transform_2, window_bounds = array<i64: 1, 64>}, {pipeline_mode = #tpu.pipeline_mode<synchronous>, transform_indices = @transform_3, window_bounds = array<i64: 64, 32>}, {pipeline_mode = #tpu.pipeline_mode<synchronous>, transform_indices = @transform_4, window_bounds = array<i64: 1, 32>}, {pipeline_mode = #tpu.pipeline_mode<synchronous>, transform_indices = @transform_5, window_bounds = array<i64: 1, 32>}, {pipeline_mode = #tpu.pipeline_mode<synchronous>, transform_indices = @transform_6, window_bounds = array<i64: 1, 1>}, {transform_indices = @transform_7, window_bounds = array<i64: 1, 1, 16>}]} {
    %c0 = arith.constant 0 : index
    %c0_0 = arith.constant 0 : index
    %0 = vector.load %arg1[%c0, %c0_0] : memref<16x16xbf16, #tpu.memory_space<vmem>>, vector<16x16xbf16>
    %c0_1 = arith.constant 0 : index
    %c0_2 = arith.constant 0 : index
    %1 = vector.load %arg2[%c0_1, %c0_2] : memref<16x64xbf16, #tpu.memory_space<vmem>>, vector<16x64xbf16>
    %cst = arith.constant dense<0.000000e+00> : vector<16x64xf32>
    %2 = tpu.matmul %0, %1, %cst {dimension_numbers = #tpu.dot_dimension_numbers<[1], [0], [0], [1], [0, 0, 1, 1], [], []>} : vector<16x16xbf16>, vector<16x64xbf16>, vector<16x64xf32> -> vector<16x64xf32>
    %c0_3 = arith.constant 0 : index
    %c0_4 = arith.constant 0 : index
    %3 = vector.load %arg3[%c0_3, %c0_4] : memref<1x64xf32, #tpu.memory_space<vmem>>, vector<1x64xf32>
    %4 = vector.broadcast %3 : vector<1x64xf32> to vector<16x64xf32>
    %5 = arith.addf %2, %4 : vector<16x64xf32>
    %cst_5 = arith.constant 0.000000e+00 : f32
    %6 = vector.broadcast %cst_5 : f32 to vector<16x64xf32>
    %7 = arith.maximumf %5, %6 : vector<16x64xf32>
    %8 = arith.truncf %7 : vector<16x64xf32> to vector<16x64xbf16>
    %c0_6 = arith.constant 0 : index
    %c0_7 = arith.constant 0 : index
    %9 = vector.load %arg4[%c0_6, %c0_7] : memref<64x32xbf16, #tpu.memory_space<vmem>>, vector<64x32xbf16>
    %cst_8 = arith.constant dense<0.000000e+00> : vector<16x32xf32>
    %10 = tpu.matmul %8, %9, %cst_8 {dimension_numbers = #tpu.dot_dimension_numbers<[1], [0], [0], [1], [0, 0, 1, 1], [], []>} : vector<16x64xbf16>, vector<64x32xbf16>, vector<16x32xf32> -> vector<16x32xf32>
    %c0_9 = arith.constant 0 : index
    %c0_10 = arith.constant 0 : index
    %11 = vector.load %arg5[%c0_9, %c0_10] : memref<1x32xf32, #tpu.memory_space<vmem>>, vector<1x32xf32>
    %12 = vector.broadcast %11 : vector<1x32xf32> to vector<16x32xf32>
    %13 = arith.addf %10, %12 : vector<16x32xf32>
    %cst_11 = arith.constant 0.000000e+00 : f32
    %14 = vector.broadcast %cst_11 : f32 to vector<16x32xf32>
    %15 = arith.maximumf %13, %14 : vector<16x32xf32>
    %c0_12 = arith.constant 0 : index
    %c0_13 = arith.constant 0 : index
    %16 = vector.load %arg6[%c0_12, %c0_13] : memref<1x32xbf16, #tpu.memory_space<vmem>>, vector<1x32xbf16>
    %17 = arith.truncf %15 : vector<16x32xf32> to vector<16x32xbf16>
    %cst_14 = arith.constant dense<0.000000e+00> : vector<1x16xf32>
    %18 = tpu.matmul %16, %17, %cst_14 {dimension_numbers = #tpu.dot_dimension_numbers<[1], [1], [0], [0], [0, 0, 1, 0], [], []>} : vector<1x32xbf16>, vector<16x32xbf16>, vector<1x16xf32> -> vector<1x16xf32>
    %c0_15 = arith.constant 0 : index
    %c0_16 = arith.constant 0 : index
    %19 = vector.load %arg7[%c0_15, %c0_16] : memref<1x1xf32, #tpu.memory_space<vmem>>, vector<1x1xf32>
    %20 = vector.broadcast %19 : vector<1x1xf32> to vector<1x16xf32>
    %21 = arith.addf %18, %20 : vector<1x16xf32>
    %22 = vector.shape_cast %21 : vector<1x16xf32> to vector<1x1x16xf32>
    %c0_17 = arith.constant 0 : index
    %c0_18 = arith.constant 0 : index
    %c0_19 = arith.constant 0 : index
    %23 = vector.load %arg8[%c0_17, %c0_18, %c0_19] : memref<1x1x16xf32, #tpu.memory_space<vmem>>, vector<1x1x16xf32>
    tpu.vector_store %arg8[%c0_17, %c0_18, %c0_19], %22 {strides = array<i32>} : memref<1x1x16xf32, #tpu.memory_space<vmem>>, vector<1x1x16xf32>,
    return
  }
  func.func @transform_0(%arg0: i32) -> (i32, i32) {
    %c0_i32 = arith.constant 0 : i32
    %c0_i32_0 = arith.constant 0 : i32
    return %arg0, %c0_i32 : i32, i32
  }
  func.func @transform_1(%arg0: i32) -> (i32, i32) {
    %c0_i32 = arith.constant 0 : i32
    %c0_i32_0 = arith.constant 0 : i32
    %c0_i32_1 = arith.constant 0 : i32
    return %c0_i32, %c0_i32_0 : i32, i32
  }
  func.func @transform_2(%arg0: i32) -> (i32, i32) {
    %c0_i32 = arith.constant 0 : i32
    %c0_i32_0 = arith.constant 0 : i32
    %c0_i32_1 = arith.constant 0 : i32
    return %c0_i32, %c0_i32_0 : i32, i32
  }
  func.func @transform_3(%arg0: i32) -> (i32, i32) {
    %c0_i32 = arith.constant 0 : i32
    %c0_i32_0 = arith.constant 0 : i32
    %c0_i32_1 = arith.constant 0 : i32
    return %c0_i32, %c0_i32_0 : i32, i32
  }
  func.func @transform_4(%arg0: i32) -> (i32, i32) {
    %c0_i32 = arith.constant 0 : i32
    %c0_i32_0 = arith.constant 0 : i32
    %c0_i32_1 = arith.constant 0 : i32
    return %c0_i32, %c0_i32_0 : i32, i32
  }
  func.func @transform_5(%arg0: i32) -> (i32, i32) {
    %c0_i32 = arith.constant 0 : i32
    %c0_i32_0 = arith.constant 0 : i32
    %c0_i32_1 = arith.constant 0 : i32
    return %c0_i32, %c0_i32_0 : i32, i32
  }
  func.func @transform_6(%arg0: i32) -> (i32, i32) {
    %c0_i32 = arith.constant 0 : i32
    %c0_i32_0 = arith.constant 0 : i32
    %c0_i32_1 = arith.constant 0 : i32
    return %c0_i32, %c0_i32_0 : i32, i32
  }
  func.func @transform_7(%arg0: i32) -> (i32, i32, i32) {
    %c0_i32 = arith.constant 0 : i32
    %c0_i32_0 = arith.constant 0 : i32
    %c0_i32_1 = arith.constant 0 : i32
    return %arg0, %c0_i32, %c0_i32_0 : i32, i32, i32
  }
}

</mosaic_0001>

<llo_original>
// kernel: tpu_custom_call.1
$region0: #{tpu_custom_call.1}
  #allocation0 [shape = 'u32[]', space=smem, size = 0x4, offset = 0x4, fixed_abs, tag = 'smem constant byte address 0x4 - core index']
  #allocation1 [shape = 'u32[144,128]{1,0:T(1,128)}', space=vmem, size = 0x12000, scoped, tag = 'internal scratch']
  #allocation2 [shape = 'f32[1,1]{1,0:T(1,128)S(1)}', space=vmem, size = 0x200, scoped, tag = 'scoped memory for tpu_custom_call.1']
  %s0 = inlined_call_operand.vmem [shape: bf16[16,16], index: 0, kind: input, shape index: {}]
  %s1 = inlined_call_operand.vmem [shape: bf16[16,64], index: 1, kind: input, shape index: {}]
  %s2 = inlined_call_operand.vmem [shape: f32[1,64], index: 2, kind: input, shape index: {}]
  %s3 = inlined_call_operand.vmem [shape: bf16[64,32], index: 3, kind: input, shape index: {}]
  %s4 = inlined_call_operand.vmem [shape: f32[1,32], index: 4, kind: input, shape index: {}]
  %s5 = inlined_call_operand.vmem [shape: bf16[1,32], index: 5, kind: input, shape index: {}]
  %s6 = inlined_call_operand.<no memory space> [shape: f32[1,1], index: 6, kind: input, shape index: {}]
  %s7 = inlined_call_operand.hbm [shape: f32[1,1,16], index: 7, kind: output, shape index: {}]
  %s8 = sld [smem:[#allocation0]]
  $region38: #{tpu_custom_call.1} parent=0
    _
  %s10 = ssub.s32 1, %s8
  %s11 = scalar_select 0, %s10, %s8
  %v12 = vstv %s6
  %13 = vst [vmem:[#allocation2] sm:$0x1] %v12
  $region1: #{tpu_custom_call.1} parent=0
    #allocation3 [shape = 'u8[512]{0}', space=vmem, size = 0x400, scoped, tag = 'output window, operand 0, single buffered']
    #allocation4 [shape = 's32[1]{0}', space=sflag, size = 0x4, scoped, tag = 'scoped memory for tpu_custom_call.1']
    %14 = vsyncpa [#allocation4], 0
    // Predicated region
    $region2: #{tpu_custom_call.1} parent=1 // pred_check
      _
    $region3: #{tpu_custom_call.1} parent=1 // pred_check_branch
      %16 = sbr.rel (0) target = $region5
    $region4: #{tpu_custom_call.1} parent=1 // pred_region
      _
    $region5: #{tpu_custom_call.1} parent=1 // pred_fallthru
      _
    // Predicated region
    $region6: #{tpu_custom_call.1} parent=1 // pred_check
      _
    $region7: #{tpu_custom_call.1} parent=1 // pred_check_branch
      %18 = sbr.rel (0) target = $region9
    $region8: #{tpu_custom_call.1} parent=1 // pred_region
      _
    $region9: #{tpu_custom_call.1} parent=1 // pred_fallthru
      _
    // Predicated region
    $region10: #{tpu_custom_call.1} parent=1 // pred_check
      _
    $region11: #{tpu_custom_call.1} parent=1 // pred_check_branch
      %20 = sbr.rel (0) target = $region13
    $region12: #{tpu_custom_call.1} parent=1 // pred_region
      _
    $region13: #{tpu_custom_call.1} parent=1 // pred_fallthru
      _
    // Predicated region
    $region14: #{tpu_custom_call.1} parent=1 // pred_check
      _
    $region15: #{tpu_custom_call.1} parent=1 // pred_check_branch
      %22 = sbr.rel (0) target = $region17
    $region16: #{tpu_custom_call.1} parent=1 // pred_region
      _
    $region17: #{tpu_custom_call.1} parent=1 // pred_fallthru
      _
    // Predicated region
    $region18: #{tpu_custom_call.1} parent=1 // pred_check
      _
    $region19: #{tpu_custom_call.1} parent=1 // pred_check_branch
      %24 = sbr.rel (0) target = $region21
    $region20: #{tpu_custom_call.1} parent=1 // pred_region
      _
    $region21: #{tpu_custom_call.1} parent=1 // pred_fallthru
      _
    // Predicated region
    $region22: #{tpu_custom_call.1} parent=1 // pred_check
      _
    $region23: #{tpu_custom_call.1} parent=1 // pred_check_branch
      %26 = sbr.rel (0) target = $region25
    $region24: #{tpu_custom_call.1} parent=1 // pred_region
      _
    $region25: #{tpu_custom_call.1} parent=1 // pred_fallthru
      _
    // Predicated region
    $region26: #{tpu_custom_call.1} parent=1 // pred_check
      _
    $region27: #{tpu_custom_call.1} parent=1 // pred_check_branch
      %28 = sbr.rel (0) target = $region29
    $region28: #{tpu_custom_call.1} parent=1 // pred_region
      _
    $region29: #{tpu_custom_call.1} parent=1 // pred_fallthru
      _
    %v30 = vld [vmem:[%s0] sm:$0xf]
    %v31 = vld [vmem:[%s0 + $0x4] sm:$0xf]
    %v32 = vld [vmem:[%s1] sm:$0xf]
    %v33 = vld [vmem:[%s1 + $0x4] sm:$0xf]
    %v34 = vld [vmem:[%s2] sm:$0x1]
    %v36 = vlaneseq
    %v37 = vshrl.u32 %v36, 7
    %v38 = vsub.s32 0, %v37
    %v39 = vrot.slane %v34, %v38
    %v43 = vunpack.c.l.b16 %v30
    %v44 = vunpack.c.l.b16 %v31
    %v45 = vpack.c.b16 %v44, %v43
    %v48 = vunpack.c.l.b16 %v32
    %v49 = vunpack.c.l.b16 %v33
    %v50 = vpack.c.b16 %v49, %v48
    %vm52 = vcmask 130048
    %v54 = vsel %vm52, %v45, 0
    %56 = vmatprep.subr.bf16.mxu0 0
    %57 = vmatpush1.bf16.msra.mxu0 0
    %58 = vmatprep.subr.bf16.mxu0 0
    %59 = vmatpush1.bf16.msra.mxu0 0
    %60 = vmatprep.subr.bf16.mxu0 0
    %61 = vmatpush1.bf16.msra.mxu0 0
    %62 = vmatprep.subr.bf16.mxu0 0
    %63 = vmatpush1.bf16.msra.mxu0 0
    %64 = vmatprep.subr.bf16.mxu0 0
    %65 = vmatpush1.bf16.msra.mxu0 0
    %66 = vmatprep.subr.bf16.mxu0 0
    %67 = vmatpush1.bf16.msra.mxu0 0
    %68 = vmatprep.subr.bf16.mxu0 0
    %69 = vmatpush1.bf16.msra.mxu0 0
    %70 = vmatprep.subr.bf16.mxu0 0
    %71 = vmatpush1.bf16.msra.mxu0 %v50
    %72 = vmatprep.subr.bf16.mxu0 0
    %73 = vmatpush2.bf16.msra.mxu0 0
    %74 = vmatprep.subr.bf16.mxu0 0
    %75 = vmatpush2.bf16.msra.mxu0 0
    %76 = vmatprep.subr.bf16.mxu0 0
    %77 = vmatpush2.bf16.msra.mxu0 0
    %78 = vmatprep.subr.bf16.mxu0 0
    %79 = vmatpush2.bf16.msra.mxu0 0
    %80 = vmatprep.subr.bf16.mxu0 0
    %81 = vmatpush2.bf16.msra.mxu0 0
    %82 = vmatprep.subr.bf16.mxu0 0
    %83 = vmatpush2.bf16.msra.mxu0 0
    %84 = vmatprep.subr.bf16.mxu0 0
    %85 = vmatpush2.bf16.msra.mxu0 0
    %86 = vmatprep.subr.bf16.mxu0 0
    %87 = vmatpush2.bf16.msra.mxu0 0
    %88 = vmatprep.mubr.bf16.mxu0 0
    %89 = vmatmul.mubr.bf16.gmra.mxu0 %v54
    %v90 = vpop.f32.mrf.mxu0
    %v91 = vadd.f32 %v39, %v90
    %v92 = vpop.f32.mrf.mxu0
    %v93 = vpop.f32.mrf.mxu0
    %v94 = vadd.f32 %v39, %v93
    %v95 = vpop.f32.mrf.mxu0
    %96 = vdwg.mxu0
    %v97 = vmax.f32 %v91, 0.0
    %v98 = vmax.f32 %v94, 0.0
    %v99 = vpack.c.bf16 %v98, %v97
    %v100 = vld [vmem:[%s3] sm:$0xf]
    %v101 = vld [vmem:[%s3 + $0x4] sm:$0xf]
    %v102 = vld [vmem:[%s3 + $0x8] sm:$0xf]
    %v103 = vld [vmem:[%s3 + $0xc] sm:$0xf]
    %v104 = vld [vmem:[%s3 + $0x10] sm:$0xf]
    %v105 = vld [vmem:[%s3 + $0x14] sm:$0xf]
    %v106 = vld [vmem:[%s3 + $0x18] sm:$0xf]
    %v107 = vld [vmem:[%s3 + $0x1c] sm:$0xf]
    %v108 = vld [vmem:[%s4] sm:$0x1]
    %v110 = vlaneseq
    %v111 = vshrl.u32 %v110, 7
    %v112 = vsub.s32 0, %v111
    %v113 = vrot.slane %v108, %v112
    %v123 = vunpack.c.l.b16 %v100
    %v124 = vunpack.c.l.b16 %v101
    %v125 = vunpack.c.l.b16 %v102
    %v126 = vunpack.c.l.b16 %v103
    %v127 = vunpack.c.l.b16 %v104
    %v128 = vunpack.c.l.b16 %v105
    %v129 = vunpack.c.l.b16 %v106
    %v130 = vunpack.c.l.b16 %v107
    %v131 = vpack.c.b16 %v124, %v123
    %v132 = vpack.c.b16 %v126, %v125
    %v133 = vpack.c.b16 %v128, %v127
    %v134 = vpack.c.b16 %v130, %v129
    %vm139 = vcmask 523264
    %v141 = vsel %vm139, %v99, 0
    %143 = vmatprep.subr.bf16.mxu0 0
    %144 = vmatpush1.bf16.msra.mxu0 0
    %145 = vmatprep.subr.bf16.mxu0 0
    %146 = vmatpush1.bf16.msra.mxu0 0
    %147 = vmatprep.subr.bf16.mxu0 0
    %148 = vmatpush1.bf16.msra.mxu0 0
    %149 = vmatprep.subr.bf16.mxu0 0
    %150 = vmatpush1.bf16.msra.mxu0 0
    %151 = vmatprep.subr.bf16.mxu0 0
    %152 = vmatpush1.bf16.msra.mxu0 %v134
    %153 = vmatprep.subr.bf16.mxu0 0
    %154 = vmatpush1.bf16.msra.mxu0 %v133
    %155 = vmatprep.subr.bf16.mxu0 0
    %156 = vmatpush1.bf16.msra.mxu0 %v132
    %157 = vmatprep.subr.bf16.mxu0 0
    %158 = vmatpush1.bf16.msra.mxu0 %v131
    %159 = vmatprep.subr.bf16.mxu0 0
    %160 = vmatpush2.bf16.msra.mxu0 0
    %161 = vmatprep.subr.bf16.mxu0 0
    %162 = vmatpush2.bf16.msra.mxu0 0
    %163 = vmatprep.subr.bf16.mxu0 0
    %164 = vmatpush2.bf16.msra.mxu0 0
    %165 = vmatprep.subr.bf16.mxu0 0
    %166 = vmatpush2.bf16.msra.mxu0 0
    %167 = vmatprep.subr.bf16.mxu0 0
    %168 = vmatpush2.bf16.msra.mxu0 0
    %169 = vmatprep.subr.bf16.mxu0 0
    %170 = vmatpush2.bf16.msra.mxu0 0
    %171 = vmatprep.subr.bf16.mxu0 0
    %172 = vmatpush2.bf16.msra.mxu0 0
    %173 = vmatprep.subr.bf16.mxu0 0
    %174 = vmatpush2.bf16.msra.mxu0 0
    %175 = vmatprep.mubr.bf16.mxu0 0
    %176 = vmatmul.mubr.bf16.gmra.mxu0 %v141
    %v177 = vpop.f32.mrf.mxu0
    %v178 = vadd.f32 %v113, %v177
    %v179 = vpop.f32.mrf.mxu0
    %v180 = vpop.f32.mrf.mxu0
    %v181 = vadd.f32 %v113, %v180
    %v182 = vpop.f32.mrf.mxu0
    %183 = vdwg.mxu0
    %v184 = vmax.f32 %v178, 0.0
    %v185 = vmax.f32 %v181, 0.0
    %v186 = vld [vmem:[%s5] sm:$0x1]
    %v187 = vpack.c.bf16 %v185, %v184
    %v188 = vld [vmem:[#allocation2] sm:$0x1]
    %190 = vset.pattern.permute.xlu0 0
    %191 = vperm.xlu0 %190, %v188
    %v192 = vpop.permute.xlu0 %191
    %v194 = vlaneseq
    %v195 = vshrl.u32 %v194, 7
    %v196 = vsub.s32 0, %v195
    %v197 = vrot.slane %v192, %v196
    %vm198 = vcmask 261120
    %v200 = vsel %vm198, %v186, 0
    %v203 = vsel %vm198, %v187, 0
    %205 = vmatprep.subr.bf16.mxu0 0
    %206 = vmatpush1.bf16.xpose.msra.mxu0 0
    %207 = vmatprep.subr.bf16.mxu0 0
    %208 = vmatpush1.bf16.xpose.msra.mxu0 0
    %209 = vmatprep.subr.bf16.mxu0 0
    %210 = vmatpush1.bf16.xpose.msra.mxu0 0
    %211 = vmatprep.subr.bf16.mxu0 0
    %212 = vmatpush1.bf16.xpose.msra.mxu0 0
    %213 = vmatprep.subr.bf16.mxu0 0
    %214 = vmatpush1.bf16.xpose.msra.mxu0 0
    %215 = vmatprep.subr.bf16.mxu0 0
    %216 = vmatpush1.bf16.xpose.msra.mxu0 0
    %217 = vmatprep.subr.bf16.mxu0 0
    %218 = vmatpush1.bf16.xpose.msra.mxu0 0
    %219 = vmatprep.subr.bf16.mxu0 0
    %220 = vmatpush1.bf16.xpose.msra.mxu0 %v203
    %221 = vmatprep.subr.bf16.mxu0 0
    %222 = vmatpush2.bf16.xpose.msra.mxu0 0
    %223 = vmatprep.subr.bf16.mxu0 0
    %224 = vmatpush2.bf16.xpose.msra.mxu0 0
    %225 = vmatprep.subr.bf16.mxu0 0
    %226 = vmatpush2.bf16.xpose.msra.mxu0 0
    %227 = vmatprep.subr.bf16.mxu0 0
    %228 = vmatpush2.bf16.xpose.msra.mxu0 0
    %229 = vmatprep.subr.bf16.mxu0 0
    %230 = vmatpush2.bf16.xpose.msra.mxu0 0
    %231 = vmatprep.subr.bf16.mxu0 0
    %232 = vmatpush2.bf16.xpose.msra.mxu0 0
    %233 = vmatprep.subr.bf16.mxu0 0
    %234 = vmatpush2.bf16.xpose.msra.mxu0 0
    %235 = vmatprep.subr.bf16.mxu0 0
    %236 = vmatpush2.bf16.xpose.msra.mxu0 0
    %237 = vmatprep.mubr.bf16.mxu0 0
    %238 = vmatmul.mubr.bf16.gmra.mxu0 %v200
    %v239 = vpop.f32.mrf.mxu0
    %v240 = vadd.f32 %v197, %v239
    %v241 = vpop.f32.mrf.mxu0
    %v242 = vpop.f32.mrf.mxu0
    %v243 = vpop.f32.mrf.mxu0
    %244 = vdwg.mxu0
    %vm245 = vcmask 122880
    %246 = vst.msk [vmem:[#allocation3] sm:$0x1] %vm245, %v240
    // Predicated region
    $region30: #{tpu_custom_call.1} parent=1 // pred_check
      _
    $region31: #{tpu_custom_call.1} parent=1 // pred_check_branch
      %248 = sbr.rel (0) target = $region33
    $region32: #{tpu_custom_call.1} parent=1 // pred_region
      %s250 = ssub.s32 16, 16
      %251 = vsyncadd [#allocation4], %s250
      %s253 = sshll.u32 [#allocation3], 4
      %s254 = int_to_ptr.vmem [resolvable:$true] %s253
      %256 = dma.vmem_to_hbm [thread:$0]  %s254, 16, %s7, [#allocation4]
    $region33: #{tpu_custom_call.1} parent=1 // pred_fallthru
      _
    // Predicated region
    $region34: #{tpu_custom_call.1} parent=1 // pred_check
      _
    $region35: #{tpu_custom_call.1} parent=1 // pred_check_branch
      %258 = sbr.rel (0) target = $region37
    $region36: #{tpu_custom_call.1} parent=1 // pred_region
      %259 = dma.done [#allocation4], 16
    $region37: #{tpu_custom_call.1} parent=1 // pred_fallthru
      _
    %260 = vsyncpa [#allocation4], 1

</llo_original>
